<compile_context>
chip_gen: v7x
topology: tpu7x:2x2x1
jax: 0.10.0
libtpu: 0.0.40
codegen_flags: <defaults>
</compile_context>

<pallas_src>
import functools

import jax
import jax.numpy as jnp
from jax.experimental import pallas as pl
from jax.experimental.pallas import tpu as pltpu


def _round_up(x, m):
    return ((x + m - 1) // m) * m


def _make_kernel(num_classes, tile_hw, hw_valid, n_total, smooth):
    C = num_classes

    def kernel(x_ref, t_ref, out_ref, ce_acc, inter_acc, psum_acc, tsum_acc):
        b = pl.program_id(0)
        j = pl.program_id(1)

        @pl.when(jnp.logical_and(b == 0, j == 0))
        def _init():
            ce_acc[...] = jnp.zeros_like(ce_acc)
            inter_acc[...] = jnp.zeros_like(inter_acc)
            psum_acc[...] = jnp.zeros_like(psum_acc)
            tsum_acc[...] = jnp.zeros_like(tsum_acc)

        # (C, T): classes on sublanes, pixels on lanes. Upcast after load so the
        # HBM stream stays in the input dtype.
        logits = x_ref[0].astype(jnp.float32)            # (C, T)
        tgt = t_ref[0]                                   # (1, T) int32

        # one-hot over the class (sublane) axis; padded targets are -1 -> all zero
        cls_ids = jax.lax.broadcasted_iota(jnp.int32, (C, tile_hw), 0)
        onehot = (cls_ids == tgt).astype(jnp.float32)    # (C, T)

        # mask lanes past the true H*W extent of this batch element
        pix = jax.lax.broadcasted_iota(jnp.int32, (1, tile_hw), 1) + j * tile_hw
        valid = (pix < hw_valid).astype(jnp.float32)     # (1, T)

        # numerically stable softmax / log-softmax over the class (sublane) axis
        # (C=4 sublanes per vreg -> the cross-sublane reduce is tiny XLU work;
        #  the kernel is HBM-bound.)
        m = jnp.max(logits, axis=0, keepdims=True)       # (1, T)
        z = logits - m
        e = jnp.exp(z)
        s = jnp.sum(e, axis=0, keepdims=True)            # (1, T)
        logp = z - jnp.log(s)                            # (C, T)
        p = e / s                                        # (C, T) softmax (exact div)

        # per-lane partial sums; single cross-lane reduce deferred to finalize
        ce_acc[...] += -jnp.sum(onehot * logp, axis=0, keepdims=True)
        inter_acc[...] += p * onehot
        psum_acc[...] += p * valid
        tsum_acc[...] += onehot

        @pl.when(jnp.logical_and(b == pl.num_programs(0) - 1,
                                 j == pl.num_programs(1) - 1))
        def _finalize():
            ce_mean = jnp.sum(ce_acc[...], keepdims=True) / jnp.float32(n_total)  # (1,1)
            inter = jnp.sum(inter_acc[...], axis=1, keepdims=True)                # (C,1)
            union = (jnp.sum(psum_acc[...], axis=1, keepdims=True)
                     + jnp.sum(tsum_acc[...], axis=1, keepdims=True))             # (C,1)
            dice = (2.0 * inter + smooth) / (union + smooth)                      # (C,1)
            dice_loss = jnp.sum(1.0 - dice, keepdims=True) / jnp.float32(C)       # (1,1)
            out_ref[...] = ce_mean + dice_loss

    return kernel


@functools.partial(jax.jit, static_argnames=("num_classes", "smooth", "tile_hw"))
def cross_entropy_dice_loss(preds, targets, num_classes=4, smooth=1.0, tile_hw=8192):
    """preds: [B, C, H, W] logits (any float dtype); targets: [B, H, W] int class indices."""
    B, C, H, W = preds.shape
    assert C == num_classes
    HW = H * W
    N = B * HW

    # Free views of the NCHW tensor: pixels on the last (lane) axis, no transpose,
    # no dtype cast in the wrapper.
    x = preds.reshape(B, C, HW)
    t = targets.reshape(B, 1, HW).astype(jnp.int32)

    # Lane tile: multiple of 128, clamped so small images use a single tile.
    tile = min(_round_up(tile_hw, 128), _round_up(HW, 128))
    hw_pad = _round_up(HW, tile)
    if hw_pad != HW:
        x = jnp.pad(x, ((0, 0), (0, 0), (0, hw_pad - HW)))
        t = jnp.pad(t, ((0, 0), (0, 0), (0, hw_pad - HW)), constant_values=-1)

    kernel = _make_kernel(num_classes, tile, HW, N, float(smooth))

    out = pl.pallas_call(
        kernel,
        out_shape=jax.ShapeDtypeStruct((1, 1), jnp.float32),
        grid_spec=pltpu.PrefetchScalarGridSpec(
            num_scalar_prefetch=0,
            grid=(B, hw_pad // tile),
            in_specs=[
                pl.BlockSpec((1, C, tile), lambda b, j: (b, 0, j)),
                pl.BlockSpec((1, 1, tile), lambda b, j: (b, 0, j)),
            ],
            out_specs=pl.BlockSpec((1, 1), lambda b, j: (0, 0)),
            scratch_shapes=[
                pltpu.VMEM((1, tile), jnp.float32),            # ce partial sums
                pltpu.VMEM((num_classes, tile), jnp.float32),  # intersection per class
                pltpu.VMEM((num_classes, tile), jnp.float32),  # softmax sum per class
                pltpu.VMEM((num_classes, tile), jnp.float32),  # target sum per class
            ],
        ),
        compiler_params=pltpu.CompilerParams(
            dimension_semantics=("arbitrary", "arbitrary")),
    )(x, t)
    return out[0, 0]


def _reference_loss(preds, targets, num_classes=4, smooth=1.0):
    """Pure-JAX reference mirroring the PyTorch module."""
    logits = preds.astype(jnp.float32)
    logp = jax.nn.log_softmax(logits, axis=1)                  # [B, C, H, W]
    p = jnp.exp(logp)
    onehot = jax.nn.one_hot(targets, num_classes, axis=1)      # [B, C, H, W]
    ce = -jnp.mean(jnp.sum(onehot * logp, axis=1))
    dice_loss = 0.0
    for c in range(num_classes):
        pred_flat = p[:, c].reshape(-1)
        tgt_flat = (targets == c).astype(jnp.float32).reshape(-1)
        inter = jnp.sum(pred_flat * tgt_flat)
        union = jnp.sum(pred_flat) + jnp.sum(tgt_flat)
        dice = (2.0 * inter + smooth) / (union + smooth)
        dice_loss += 1.0 - dice
    return ce + dice_loss / num_classes


if __name__ == "__main__":
    B, C, H, W = 2, 4, 16, 16
    key = jax.random.PRNGKey(0)
    k1, k2 = jax.random.split(key)
    preds = jax.random.normal(k1, (B, C, H, W), dtype=jnp.float32)
    targets = jax.random.randint(k2, (B, H, W), 0, C, dtype=jnp.int32)

    loss = cross_entropy_dice_loss(preds, targets, num_classes=C)
    loss = jax.block_until_ready(loss)

    ref = _reference_loss(preds, targets, num_classes=C)
    assert jnp.allclose(loss, ref, rtol=1e-5, atol=1e-5), (loss, ref)

    print("KERNEL_OK")
</pallas_src>

<mosaic_0001>
module attributes {stable_mosaic.version = 11 : i64} {
  func.func @kernel(%arg0: i32, %arg1: i32, %arg2: memref<1x4x256xf32, #tpu.memory_space<vmem>>, %arg3: memref<1x1x256xi32, #tpu.memory_space<vmem>>, %arg4: memref<1x1xf32, #tpu.memory_space<vmem>>, %arg5: memref<1x256xf32, #tpu.memory_space<vmem>>, %arg6: memref<4x256xf32, #tpu.memory_space<vmem>>, %arg7: memref<4x256xf32, #tpu.memory_space<vmem>>, %arg8: memref<4x256xf32, #tpu.memory_space<vmem>>) attributes {dimension_semantics = [#tpu.dimension_semantics<arbitrary>, #tpu.dimension_semantics<arbitrary>], iteration_bounds = array<i64: 2, 1>, scalar_prefetch = 0 : i64, scratch_operands = 4 : i64, tpu.core_type = #tpu.core_type<tc>, window_params = [{transform_indices = @transform_0, window_bounds = array<i64: 1, 4, 256>}, {transform_indices = @transform_1, window_bounds = array<i64: 1, 1, 256>}, {pipeline_mode = #tpu.pipeline_mode<synchronous>, transform_indices = @transform_2, window_bounds = array<i64: 1, 1>}]} {
    %c0_i32 = arith.constant 0 : i32
    %0 = arith.cmpi eq, %arg0, %c0_i32 : i32
    %c0_i32_0 = arith.constant 0 : i32
    %1 = arith.cmpi eq, %arg1, %c0_i32_0 : i32
    %2 = arith.andi %0, %1 : i1
    %3 = arith.extui %2 : i1 to i32
    %c0_i32_1 = arith.constant 0 : i32
    %4 = arith.cmpi ne, %3, %c0_i32_1 : i32
    scf.if %4 {
      %cst_29 = arith.constant 0.000000e+00 : f32
      %59 = vector.broadcast %cst_29 : f32 to vector<1x256xf32>
      %c0_30 = arith.constant 0 : index
      %c0_31 = arith.constant 0 : index
      %60 = vector.load %arg5[%c0_30, %c0_31] : memref<1x256xf32, #tpu.memory_space<vmem>>, vector<1x256xf32>
      tpu.vector_store %arg5[%c0_30, %c0_31], %59 {strides = array<i32>} : memref<1x256xf32, #tpu.memory_space<vmem>>, vector<1x256xf32>,
      %cst_32 = arith.constant 0.000000e+00 : f32
      %61 = vector.broadcast %cst_32 : f32 to vector<4x256xf32>
      %c0_33 = arith.constant 0 : index
      %c0_34 = arith.constant 0 : index
      %62 = vector.load %arg6[%c0_33, %c0_34] : memref<4x256xf32, #tpu.memory_space<vmem>>, vector<4x256xf32>
      tpu.vector_store %arg6[%c0_33, %c0_34], %61 {strides = array<i32>} : memref<4x256xf32, #tpu.memory_space<vmem>>, vector<4x256xf32>,
      %cst_35 = arith.constant 0.000000e+00 : f32
      %63 = vector.broadcast %cst_35 : f32 to vector<4x256xf32>
      %c0_36 = arith.constant 0 : index
      %c0_37 = arith.constant 0 : index
      %64 = vector.load %arg7[%c0_36, %c0_37] : memref<4x256xf32, #tpu.memory_space<vmem>>, vector<4x256xf32>
      tpu.vector_store %arg7[%c0_36, %c0_37], %63 {strides = array<i32>} : memref<4x256xf32, #tpu.memory_space<vmem>>, vector<4x256xf32>,
      %cst_38 = arith.constant 0.000000e+00 : f32
      %65 = vector.broadcast %cst_38 : f32 to vector<4x256xf32>
      %c0_39 = arith.constant 0 : index
      %c0_40 = arith.constant 0 : index
      %66 = vector.load %arg8[%c0_39, %c0_40] : memref<4x256xf32, #tpu.memory_space<vmem>>, vector<4x256xf32>
      tpu.vector_store %arg8[%c0_39, %c0_40], %65 {strides = array<i32>} : memref<4x256xf32, #tpu.memory_space<vmem>>, vector<4x256xf32>,
    } else {
    }
    %c0 = arith.constant 0 : index
    %c0_2 = arith.constant 0 : index
    %c0_3 = arith.constant 0 : index
    %5 = vector.load %arg2[%c0, %c0_2, %c0_3] : memref<1x4x256xf32, #tpu.memory_space<vmem>>, vector<1x4x256xf32>
    %6 = vector.shape_cast %5 : vector<1x4x256xf32> to vector<4x256xf32>
    %c0_4 = arith.constant 0 : index
    %c0_5 = arith.constant 0 : index
    %c0_6 = arith.constant 0 : index
    %7 = vector.load %arg3[%c0_4, %c0_5, %c0_6] : memref<1x1x256xi32, #tpu.memory_space<vmem>>, vector<1x1x256xi32>
    %8 = vector.shape_cast %7 : vector<1x1x256xi32> to vector<1x256xi32>
    %9 = tpu.iota {dimensions = array<i32: 0>} : vector<4x256xi32>
    %10 = vector.broadcast %8 : vector<1x256xi32> to vector<4x256xi32>
    %11 = arith.cmpi eq, %9, %10 : vector<4x256xi32>
    %12 = arith.extui %11 : vector<4x256xi1> to vector<4x256xi32>
    %13 = arith.sitofp %12 : vector<4x256xi32> to vector<4x256xf32>
    %14 = tpu.iota {dimensions = array<i32: 1>} : vector<1x256xi32>
    %c256_i32 = arith.constant 256 : i32
    %15 = arith.muli %arg1, %c256_i32 : i32
    %16 = vector.broadcast %15 : i32 to vector<1x256xi32>
    %17 = arith.addi %14, %16 : vector<1x256xi32>
    %c256_i32_7 = arith.constant 256 : i32
    %18 = vector.broadcast %c256_i32_7 : i32 to vector<1x256xi32>
    %19 = arith.cmpi slt, %17, %18 : vector<1x256xi32>
    %20 = arith.extui %19 : vector<1x256xi1> to vector<1x256xi32>
    %21 = arith.sitofp %20 : vector<1x256xi32> to vector<1x256xf32>
    %cst = arith.constant dense<0xFF800000> : vector<256xf32>
    %22 = vector.multi_reduction <maximumf>, %6, %cst [0] : vector<4x256xf32> to vector<256xf32>
    %23 = vector.shape_cast %22 : vector<256xf32> to vector<1x256xf32>
    %24 = vector.broadcast %23 : vector<1x256xf32> to vector<4x256xf32>
    %25 = arith.subf %6, %24 : vector<4x256xf32>
    %26 = math.exp %25 : vector<4x256xf32>
    %cst_8 = arith.constant dense<0.000000e+00> : vector<256xf32>
    %27 = vector.multi_reduction <add>, %26, %cst_8 [0] : vector<4x256xf32> to vector<256xf32>
    %28 = vector.shape_cast %27 : vector<256xf32> to vector<1x256xf32>
    %29 = math.log %28 : vector<1x256xf32>
    %30 = vector.broadcast %29 : vector<1x256xf32> to vector<4x256xf32>
    %31 = arith.subf %25, %30 : vector<4x256xf32>
    %32 = vector.broadcast %28 : vector<1x256xf32> to vector<4x256xf32>
    %33 = arith.divf %26, %32 : vector<4x256xf32>
    %c0_9 = arith.constant 0 : index
    %c0_10 = arith.constant 0 : index
    %34 = vector.load %arg5[%c0_9, %c0_10] : memref<1x256xf32, #tpu.memory_space<vmem>>, vector<1x256xf32>
    %35 = arith.mulf %13, %31 : vector<4x256xf32>
    %cst_11 = arith.constant dense<0.000000e+00> : vector<256xf32>
    %36 = vector.multi_reduction <add>, %35, %cst_11 [0] : vector<4x256xf32> to vector<256xf32>
    %37 = vector.shape_cast %36 : vector<256xf32> to vector<1x256xf32>
    %cst_12 = arith.constant 0.000000e+00 : f32
    %38 = vector.broadcast %cst_12 : f32 to vector<1x256xf32>
    %39 = arith.subf %38, %37 : vector<1x256xf32>
    %40 = arith.addf %34, %39 : vector<1x256xf32>
    %c0_13 = arith.constant 0 : index
    %c0_14 = arith.constant 0 : index
    %41 = vector.load %arg5[%c0_13, %c0_14] : memref<1x256xf32, #tpu.memory_space<vmem>>, vector<1x256xf32>
    tpu.vector_store %arg5[%c0_13, %c0_14], %40 {strides = array<i32>} : memref<1x256xf32, #tpu.memory_space<vmem>>, vector<1x256xf32>,
    %c0_15 = arith.constant 0 : index
    %c0_16 = arith.constant 0 : index
    %42 = vector.load %arg6[%c0_15, %c0_16] : memref<4x256xf32, #tpu.memory_space<vmem>>, vector<4x256xf32>
    %43 = arith.mulf %33, %13 : vector<4x256xf32>
    %44 = arith.addf %42, %43 : vector<4x256xf32>
    %c0_17 = arith.constant 0 : index
    %c0_18 = arith.constant 0 : index
    %45 = vector.load %arg6[%c0_17, %c0_18] : memref<4x256xf32, #tpu.memory_space<vmem>>, vector<4x256xf32>
    tpu.vector_store %arg6[%c0_17, %c0_18], %44 {strides = array<i32>} : memref<4x256xf32, #tpu.memory_space<vmem>>, vector<4x256xf32>,
    %c0_19 = arith.constant 0 : index
    %c0_20 = arith.constant 0 : index
    %46 = vector.load %arg7[%c0_19, %c0_20] : memref<4x256xf32, #tpu.memory_space<vmem>>, vector<4x256xf32>
    %47 = vector.broadcast %21 : vector<1x256xf32> to vector<4x256xf32>
    %48 = arith.mulf %33, %47 : vector<4x256xf32>
    %49 = arith.addf %46, %48 : vector<4x256xf32>
    %c0_21 = arith.constant 0 : index
    %c0_22 = arith.constant 0 : index
    %50 = vector.load %arg7[%c0_21, %c0_22] : memref<4x256xf32, #tpu.memory_space<vmem>>, vector<4x256xf32>
    tpu.vector_store %arg7[%c0_21, %c0_22], %49 {strides = array<i32>} : memref<4x256xf32, #tpu.memory_space<vmem>>, vector<4x256xf32>,
    %c0_23 = arith.constant 0 : index
    %c0_24 = arith.constant 0 : index
    %51 = vector.load %arg8[%c0_23, %c0_24] : memref<4x256xf32, #tpu.memory_space<vmem>>, vector<4x256xf32>
    %52 = arith.addf %51, %13 : vector<4x256xf32>
    %c0_25 = arith.constant 0 : index
    %c0_26 = arith.constant 0 : index
    %53 = vector.load %arg8[%c0_25, %c0_26] : memref<4x256xf32, #tpu.memory_space<vmem>>, vector<4x256xf32>
    tpu.vector_store %arg8[%c0_25, %c0_26], %52 {strides = array<i32>} : memref<4x256xf32, #tpu.memory_space<vmem>>, vector<4x256xf32>,
    %c1_i32 = arith.constant 1 : i32
    %54 = arith.cmpi eq, %arg0, %c1_i32 : i32
    %c0_i32_27 = arith.constant 0 : i32
    %55 = arith.cmpi eq, %arg1, %c0_i32_27 : i32
    %56 = arith.andi %54, %55 : i1
    %57 = arith.extui %56 : i1 to i32
    %c0_i32_28 = arith.constant 0 : i32
    %58 = arith.cmpi ne, %57, %c0_i32_28 : i32
    scf.if %58 {
      %c0_29 = arith.constant 0 : index
      %c0_30 = arith.constant 0 : index
      %59 = vector.load %arg5[%c0_29, %c0_30] : memref<1x256xf32, #tpu.memory_space<vmem>>, vector<1x256xf32>
      %60 = vector.shape_cast %59 : vector<1x256xf32> to vector<1x1x256xf32>
      %cst_31 = arith.constant dense<0.000000e+00> : vector<1xf32>
      %61 = vector.multi_reduction <add>, %60, %cst_31 [1, 2] : vector<1x1x256xf32> to vector<1xf32>
      %62 = vector.shape_cast %61 : vector<1xf32> to vector<1x1x1xf32>
      %63 = vector.extract %62[0, 0, 0] : f32 from vector<1x1x1xf32>
      %64 = vector.broadcast %63 : f32 to vector<1x1xf32>
      %cst_32 = arith.constant 5.120000e+02 : f32
      %65 = vector.broadcast %cst_32 : f32 to vector<1x1xf32>
      %66 = arith.divf %64, %65 : vector<1x1xf32>
      %c0_33 = arith.constant 0 : index
      %c0_34 = arith.constant 0 : index
      %67 = vector.load %arg6[%c0_33, %c0_34] : memref<4x256xf32, #tpu.memory_space<vmem>>, vector<4x256xf32>
      %cst_35 = arith.constant dense<0.000000e+00> : vector<4xf32>
      %68 = vector.multi_reduction <add>, %67, %cst_35 [1] : vector<4x256xf32> to vector<4xf32>
      %69 = vector.shape_cast %68 : vector<4xf32> to vector<4x1xf32>
      %c0_36 = arith.constant 0 : index
      %c0_37 = arith.constant 0 : index
      %70 = vector.load %arg7[%c0_36, %c0_37] : memref<4x256xf32, #tpu.memory_space<vmem>>, vector<4x256xf32>
      %cst_38 = arith.constant dense<0.000000e+00> : vector<4xf32>
      %71 = vector.multi_reduction <add>, %70, %cst_38 [1] : vector<4x256xf32> to vector<4xf32>
      %72 = vector.shape_cast %71 : vector<4xf32> to vector<4x1xf32>
      %c0_39 = arith.constant 0 : index
      %c0_40 = arith.constant 0 : index
      %73 = vector.load %arg8[%c0_39, %c0_40] : memref<4x256xf32, #tpu.memory_space<vmem>>, vector<4x256xf32>
      %cst_41 = arith.constant dense<0.000000e+00> : vector<4xf32>
      %74 = vector.multi_reduction <add>, %73, %cst_41 [1] : vector<4x256xf32> to vector<4xf32>
      %75 = vector.shape_cast %74 : vector<4xf32> to vector<4x1xf32>
      %76 = arith.addf %72, %75 : vector<4x1xf32>
      %cst_42 = arith.constant 2.000000e+00 : f32
      %77 = vector.broadcast %cst_42 : f32 to vector<4x1xf32>
      %78 = arith.mulf %77, %69 : vector<4x1xf32>
      %cst_43 = arith.constant 1.000000e+00 : f32
      %79 = vector.broadcast %cst_43 : f32 to vector<4x1xf32>
      %80 = arith.addf %78, %79 : vector<4x1xf32>
      %cst_44 = arith.constant 1.000000e+00 : f32
      %81 = vector.broadcast %cst_44 : f32 to vector<4x1xf32>
      %82 = arith.addf %76, %81 : vector<4x1xf32>
      %83 = arith.divf %80, %82 : vector<4x1xf32>
      %cst_45 = arith.constant 1.000000e+00 : f32
      %84 = vector.broadcast %cst_45 : f32 to vector<4x1xf32>
      %85 = arith.subf %84, %83 : vector<4x1xf32>
      %86 = vector.shape_cast %85 : vector<4x1xf32> to vector<1x4x1xf32>
      %cst_46 = arith.constant dense<0.000000e+00> : vector<1xf32>
      %87 = vector.multi_reduction <add>, %86, %cst_46 [1, 2] : vector<1x4x1xf32> to vector<1xf32>
      %88 = vector.shape_cast %87 : vector<1xf32> to vector<1x1x1xf32>
      %89 = vector.extract %88[0, 0, 0] : f32 from vector<1x1x1xf32>
      %90 = vector.broadcast %89 : f32 to vector<1x1xf32>
      %cst_47 = arith.constant 4.000000e+00 : f32
      %91 = vector.broadcast %cst_47 : f32 to vector<1x1xf32>
      %92 = arith.divf %90, %91 : vector<1x1xf32>
      %93 = arith.addf %66, %92 : vector<1x1xf32>
      %c0_48 = arith.constant 0 : index
      %c0_49 = arith.constant 0 : index
      %94 = vector.load %arg4[%c0_48, %c0_49] : memref<1x1xf32, #tpu.memory_space<vmem>>, vector<1x1xf32>
      tpu.vector_store %arg4[%c0_48, %c0_49], %93 {strides = array<i32>} : memref<1x1xf32, #tpu.memory_space<vmem>>, vector<1x1xf32>,
    } else {
    }
    return
  }
  func.func @transform_0(%arg0: i32, %arg1: i32) -> (i32, i32, i32) {
    %c0_i32 = arith.constant 0 : i32
    %c0_i32_0 = arith.constant 0 : i32
    return %arg0, %c0_i32, %arg1 : i32, i32, i32
  }
  func.func @transform_1(%arg0: i32, %arg1: i32) -> (i32, i32, i32) {
    %c0_i32 = arith.constant 0 : i32
    %c0_i32_0 = arith.constant 0 : i32
    return %arg0, %c0_i32, %arg1 : i32, i32, i32
  }
  func.func @transform_2(%arg0: i32, %arg1: i32) -> (i32, i32) {
    %c0_i32 = arith.constant 0 : i32
    %c0_i32_0 = arith.constant 0 : i32
    %c0_i32_1 = arith.constant 0 : i32
    return %c0_i32, %c0_i32_0 : i32, i32
  }
}

</mosaic_0001>

<llo_original>
// kernel: cross_entropy_dice_loss.1
$region0: #{cross_entropy_dice_loss.1}
  #allocation0 [shape = 'u32[]', space=smem, size = 0x4, offset = 0x4, fixed_abs, tag = 'smem constant byte address 0x4 - core index']
  #allocation1 [shape = 'u32[144,128]{1,0:T(1,128)}', space=vmem, size = 0x12000, scoped, tag = 'internal scratch']
  #allocation2 [shape = 'f32[1,256]{1,0:T(1,128)}', space=vmem, size = 0x400, scoped, tag = 'scratch operand']
  #allocation3 [shape = 'f32[4,256]{1,0:T(4,128)}', space=vmem, size = 0x1000, scoped, tag = 'scratch operand']
  #allocation4 [shape = 'f32[4,256]{1,0:T(4,128)}', space=vmem, size = 0x1000, scoped, tag = 'scratch operand']
  #allocation5 [shape = 'f32[4,256]{1,0:T(4,128)}', space=vmem, size = 0x1000, scoped, tag = 'scratch operand']
  %s0 = inlined_call_operand.vmem [shape: f32[2,4,256], index: 0, kind: input, shape index: {}]
  %s1 = inlined_call_operand.vmem [shape: s32[2,1,256], index: 1, kind: input, shape index: {}]
  %s2 = inlined_call_operand.hbm [shape: f32[1,1], index: 2, kind: output, shape index: {}]
  %s3 = sld [smem:[#allocation0]]
  $region49: #{cross_entropy_dice_loss.1} parent=0
    _
  %s5 = ssub.s32 1, %s3
  %s6 = scalar_select 0, %s5, %s3
  $region1: #{cross_entropy_dice_loss.1} parent=0
    #allocation6 [shape = 'u8[512]{0}', space=vmem, size = 0x400, scoped, tag = 'output window, operand 0, single buffered']
    #allocation7 [shape = 's32[2]{0}', space=sflag, size = 0x8, scoped, tag = 'scoped memory for cross_entropy_dice_loss.1']
    %7 = vsyncpa [#allocation7], 0
    loop: start=0, step=1, limit=4
    $region2: #{cross_entropy_dice_loss.1} parent=1 // loop_pre_header
      _
    $region3: #{cross_entropy_dice_loss.1} parent=1 // loop_header
      %s9 = sphi 0, %s13
      %p10 = scmp.ge.s32.totalorder %s9, 4
      %s16 = sphi 0, %s28
      %s17 = sphi 0, %s24
      %s18 = sphi 0, %s16
      %s19 = sphi 0, %s17
      %s20 = sphi 0, %s18
      %s21 = sphi 0, %s19
      %s33 = sphi 0, %s35
      %s36 = sphi 0, %s33
      %s37 = sphi 0, %s36
      %s53 = sphi 0, %s37
      %s61 = sphi 0, %s63
      %s64 = sphi 0, %s61
      %s65 = sphi 0, %s64
      %s81 = sphi 0, %s65
      %s85 = sphi 0, %s85
      %s87 = sphi 0, %s85
      %s88 = sphi 0, %s87
      %s102 = sphi 0, %s88
    $region4: #{cross_entropy_dice_loss.1} parent=1 // loop_header_branch
      %12 = sbr.rel (%p10) target = $region8
    $region5: #{cross_entropy_dice_loss.1} parent=1 // loop_body
      %s14 = ssub.s32 %s9, 1
      %s15 = ssub.s32 %s9, 2
      %s22 = sadd.s32 1, %s17
      %p23 = scmp.ge.s32.totalorder %s22, 1
      %s24 = scalar_select %p23, 0, %s22
      %s25 = sadd.s32 1, %s16
      %s26 = scalar_select %p23, %s25, %s16
      %p27 = scmp.ge.s32.totalorder %s26, 2
      %s28 = scalar_select %p27, 0, %s26
      %s29 = ssub.s32 %s16, %s28
      %s30 = ssub.s32 %s17, %s24
      %s31 = sor.u32 %s29, %s30
      %p32 = scmp.eq.s32.totalorder %s31, 0
      %s34 = sadd.s32 %s33, 1
      %s35 = scalar_select %p32, %s33, %s34
      %p38 = pneg %p32
      %p39 = scmp.eq.s32.totalorder %s9, 1
      %p40 = por %p38, %p39
      %p41 = scmp.ne.s32.totalorder %s33, %s36
      %p42 = scmp.eq.s32.totalorder %s9, 0
      %p43 = por %p41, %p42
      %p44 = scmp.ne.s32.totalorder %s33, %s36
      %p45 = scmp.eq.s32.totalorder %s14, 1
      %p46 = por %p44, %p45
      %p47 = scmp.ne.s32.totalorder %s36, %s37
      %p48 = scmp.eq.s32.totalorder %s14, 0
      %p49 = por %p47, %p48
      %p50 = scmp.ne.s32.totalorder %s36, %s37
      %p51 = scmp.eq.s32.totalorder %s15, 1
      %p52 = por %p50, %p51
      %p54 = scmp.ne.s32.totalorder %s37, %s53
      %p55 = scmp.eq.s32.totalorder %s15, 0
      %p56 = por %p54, %p55
      %s57 = ssub.s32 %s16, %s28
      %s58 = ssub.s32 %s17, %s24
      %s59 = sor.u32 %s57, %s58
      %p60 = scmp.eq.s32.totalorder %s59, 0
      %s62 = sadd.s32 %s61, 1
      %s63 = scalar_select %p60, %s61, %s62
      %p66 = pneg %p60
      %p67 = scmp.eq.s32.totalorder %s9, 1
      %p68 = por %p66, %p67
      %p69 = scmp.ne.s32.totalorder %s61, %s64
      %p70 = scmp.eq.s32.totalorder %s9, 0
      %p71 = por %p69, %p70
      %p72 = scmp.ne.s32.totalorder %s61, %s64
      %p73 = scmp.eq.s32.totalorder %s14, 1
      %p74 = por %p72, %p73
      %p75 = scmp.ne.s32.totalorder %s64, %s65
      %p76 = scmp.eq.s32.totalorder %s14, 0
      %p77 = por %p75, %p76
      %p78 = scmp.ne.s32.totalorder %s64, %s65
      %p79 = scmp.eq.s32.totalorder %s15, 1
      %p80 = por %p78, %p79
      %p82 = scmp.ne.s32.totalorder %s65, %s81
      %p83 = scmp.eq.s32.totalorder %s15, 0
      %p84 = por %p82, %p83
      %s86 = sadd.s32 %s85, 1
      %p89 = scmp.eq.s32.totalorder %s9, 1
      %p90 = scmp.ne.s32.totalorder %s85, %s87
      %p91 = scmp.eq.s32.totalorder %s9, 0
      %p92 = por %p90, %p91
      %p93 = scmp.ne.s32.totalorder %s85, %s87
      %p94 = scmp.eq.s32.totalorder %s14, 1
      %p95 = por %p93, %p94
      %p96 = scmp.ne.s32.totalorder %s87, %s88
      %p97 = scmp.eq.s32.totalorder %s14, 0
      %p98 = por %p96, %p97
      %p99 = scmp.ne.s32.totalorder %s87, %s88
      %p100 = scmp.eq.s32.totalorder %s15, 1
      %p101 = por %p99, %p100
      %p103 = scmp.ne.s32.totalorder %s88, %s102
      %p104 = scmp.eq.s32.totalorder %s15, 0
      %p105 = por %p103, %p104
      %p106 = scmp.le.s32.totalorder 1, %s9
      %p107 = scmp.lt.s32.totalorder %s9, 3
      %p108 = pnand %p106, %p107
      %p109 = pneg %p108
      // Predicated region
      $region9: #{cross_entropy_dice_loss.1} parent=5 // pred_check
        _
      $region10: #{cross_entropy_dice_loss.1} parent=5 // pred_check_branch
        %111 = sbr.rel (%p108) target = $region12
      $region11: #{cross_entropy_dice_loss.1} parent=5 // pred_region
        %s112 = ssub.s32 %s9, 1
      $region12: #{cross_entropy_dice_loss.1} parent=5 // pred_fallthru
        _
      %p113 = scmp.lt.s32.totalorder %s9, 2
      // Predicated region
      $region13: #{cross_entropy_dice_loss.1} parent=5 // pred_check
        %p114 = pneg %p113
      $region14: #{cross_entropy_dice_loss.1} parent=5 // pred_check_branch
        %116 = sbr.rel (%p114) target = $region16
      $region15: #{cross_entropy_dice_loss.1} parent=5 // pred_region
        // Predicated region
        $region17: #{cross_entropy_dice_loss.1} parent=15 // pred_check
          %p117 = pneg %p43
        $region18: #{cross_entropy_dice_loss.1} parent=15 // pred_check_branch
          %119 = sbr.rel (%p117) target = $region20
        $region19: #{cross_entropy_dice_loss.1} parent=15 // pred_region
          %s120 = smul.u32 2, %s17
          %p121 = scmp.lt.s32.totalorder %s16, 1
          %s122 = scalar_select %p121, %s16, 1
          %p123 = scmp.lt.s32.totalorder %s120, 1
          %s124 = scalar_select %p123, %s120, 1
          %s125 = smul.addr %s122, 2
          %s126 = sadd.s32 %s124, %s125
          %s127 = smul.addr %s126, 4
          %s128 = scalar_lea.vmem %s0, %s127
          %s129 = smul.u32 2, %s17
        $region20: #{cross_entropy_dice_loss.1} parent=15 // pred_fallthru
          _
        // Predicated region
        $region21: #{cross_entropy_dice_loss.1} parent=15 // pred_check
          %p130 = pneg %p71
        $region22: #{cross_entropy_dice_loss.1} parent=15 // pred_check_branch
          %132 = sbr.rel (%p130) target = $region24
        $region23: #{cross_entropy_dice_loss.1} parent=15 // pred_region
          %s133 = smul.u32 2, %s17
          %p134 = scmp.lt.s32.totalorder %s16, 1
          %s135 = scalar_select %p134, %s16, 1
          %p136 = scmp.lt.s32.totalorder %s133, 1
          %s137 = scalar_select %p136, %s133, 1
          %s138 = smul.addr %s135, 2
          %s139 = sadd.s32 %s137, %s138
          %s140 = scalar_lea.vmem %s1, %s139
          %s141 = smul.u32 2, %s17
        $region24: #{cross_entropy_dice_loss.1} parent=15 // pred_fallthru
          _
      $region16: #{cross_entropy_dice_loss.1} parent=5 // pred_fallthru
        _
      %p142 = scmp.le.s32.totalorder 1, %s9
      %p143 = scmp.lt.s32.totalorder %s9, 3
      %p144 = pnand %p142, %p143
      %p145 = pneg %p144
      // Predicated region
      $region25: #{cross_entropy_dice_loss.1} parent=5 // pred_check
        _
      $region26: #{cross_entropy_dice_loss.1} parent=5 // pred_check_branch
        %147 = sbr.rel (%p144) target = $region28
      $region27: #{cross_entropy_dice_loss.1} parent=5 // pred_region
        %s148 = ssub.s32 %s9, 1
        %s149 = smul.u32 2, %s19
        %p150 = scmp.lt.s32.totalorder %s18, 1
        %s151 = scalar_select %p150, %s18, 1
        %p152 = scmp.lt.s32.totalorder %s149, 1
        %s153 = scalar_select %p152, %s149, 1
        %s154 = smul.addr %s151, 2
        %s155 = sadd.s32 %s153, %s154
        %s156 = smul.addr %s155, 4
        %s157 = scalar_lea.vmem %s0, %s156
        %p158 = pneg %p49
        %p159 = pneg %p46
        %s160 = smul.u32 2, %s19
        %p161 = scmp.lt.s32.totalorder %s18, 1
        %s162 = scalar_select %p161, %s18, 1
        %p163 = scmp.lt.s32.totalorder %s160, 1
        %s164 = scalar_select %p163, %s160, 1
        %s165 = smul.addr %s162, 2
        %s166 = sadd.s32 %s164, %s165
        %s167 = scalar_lea.vmem %s1, %s166
        %p168 = pneg %p77
        %p169 = pneg %p74
        %p170 = pneg %p98
        %p171 = pneg %p95
        %s172 = smul.u32 2, %s19
        %p173 = scmp.lt.s32.totalorder %s18, 1
        %s174 = scalar_select %p173, %s18, 1
        %p175 = scmp.lt.s32.totalorder %s172, 1
        %s176 = scalar_select %p175, %s172, 1
        %s177 = smul.addr %s174, 2
        %s178 = sadd.s32 %s176, %s177
        %s179 = smul.addr %s178, 4
        %s180 = scalar_lea.vmem %s0, %s179
        %s181 = smul.u32 2, %s19
        %s182 = smul.u32 2, %s19
        %p183 = scmp.lt.s32.totalorder %s18, 1
        %s184 = scalar_select %p183, %s18, 1
        %p185 = scmp.lt.s32.totalorder %s182, 1
        %s186 = scalar_select %p185, %s182, 1
        %s187 = smul.addr %s184, 2
        %s188 = sadd.s32 %s186, %s187
        %s189 = scalar_lea.vmem %s1, %s188
        %s190 = smul.u32 2, %s19
        %p191 = scmp.eq.s32.totalorder %s18, 0
        %p192 = scmp.eq.s32.totalorder %s19, 0
        %p193 = pnand %p191, %p192
        %p194 = pneg %p193
        // Predicated region
        $region29: #{cross_entropy_dice_loss.1} parent=27 // pred_check
          _
        $region30: #{cross_entropy_dice_loss.1} parent=27 // pred_check_branch
          %196 = sbr.rel (%p193) target = $region32
        $region31: #{cross_entropy_dice_loss.1} parent=27 // pred_region
          %v197 = vlaneseq
          %vm198 = vcmp.ge.s32.totalorder %v197, 0
          %vm199 = vcmp.lt.s32.totalorder %v197, 256
          %vm200 = vmand %vm198, %vm199
          %201 = vst.msk [vmem:[#allocation2] sm:$0x3] %vm200, 0.0
          %202 = vst [vmem:[#allocation3] sm:$0xff] 0.0
          %203 = vst [vmem:[#allocation4] sm:$0xff] 0.0
          %204 = vst [vmem:[#allocation5] sm:$0xff] 0.0
        $region32: #{cross_entropy_dice_loss.1} parent=27 // pred_fallthru
          _
        %v205 = vld [vmem:[%s180] sm:$0xff]
        %v206 = vld [vmem:[%s189] sm:$0x3]
        %v207 = vlaneseq
        %v208 = vshrl.u32 %v207, 7
        %v209 = vlaneseq
        %v210 = vshrl.u32 %v209, 7
        %v211 = vsub.s32 0, %v210
        %v212 = vrot.slane %v206, %v211
        %v213 = vlaneseq
        %v214 = vshrl.u32 %v213, 7
        %v215 = vsub.s32 1, %v214
        %v216 = vrot.slane %v206, %v215
        %vm217 = vcmp.eq.s32.totalorder %v208, %v212
        %vm218 = vcmp.eq.s32.totalorder %v208, %v216
        %v219 = vsel %vm217, 1, 0
        %v220 = vsel %vm218, 1, 0
        %v221 = vcvt.s32.f32 %v219
        %v222 = vcvt.s32.f32 %v220
        %v223 = vlaneseq
        %v224 = vand.u32 %v223, 127
        %v225 = vadd.s32 %v224, 128
        %s226 = smul.u32 %s19, 256
        %v227 = vstv %s226
        %v228 = vadd.s32 %v224, %v227
        %v229 = vadd.s32 %v225, %v227
        %vm230 = vcmp.lt.s32.totalorder %v228, 256
        %vm231 = vcmp.lt.s32.totalorder %v229, 256
        %v232 = vsel %vm230, 1, 0
        %v233 = vsel %vm231, 1, 0
        %v234 = vcvt.s32.f32 %v232
        %v235 = vcvt.s32.f32 %v233
        %v237 = vcombine.high %v205, %v205
        %vm239 = vcmask 1043456
        %v240 = vsel %vm239, %v205, -inf
        %v241 = vrot.slane %v240, 4
        %v242 = vmax.f32 %v240, %v241
        %v243 = vrot.slane %v242, 2
        %v244 = vmax.f32 %v242, %v243
        %v245 = vrot.slane %v244, 1
        %v246 = vmax.f32 %v244, %v245
        %v247 = vsel %vm239, %v237, -inf
        %v248 = vrot.slane %v247, 4
        %v249 = vmax.f32 %v247, %v248
        %v250 = vrot.slane %v249, 2
        %v251 = vmax.f32 %v249, %v250
        %v252 = vrot.slane %v251, 1
        %v253 = vmax.f32 %v251, %v252
        %v256 = vcombine.low %v246, %v253
        %v258 = vsub.f32 %v205, %v256
        %v259 = vmul.f32 %v258, 1.442695
        %v260 = vpow.pop %v259
        %v262 = vcombine.high %v260, %v260
        %v264 = vsel %vm239, %v260, 0.0
        %v265 = vrot.slane %v264, 4
        %v266 = vadd.f32 %v264, %v265
        %v267 = vrot.slane %v266, 2
        %v268 = vadd.f32 %v266, %v267
        %v269 = vrot.slane %v268, 1
        %v270 = vadd.f32 %v268, %v269
        %v271 = vsel %vm239, %v262, 0.0
        %v272 = vrot.slane %v271, 4
        %v273 = vadd.f32 %v271, %v272
        %v274 = vrot.slane %v273, 2
        %v275 = vadd.f32 %v273, %v274
        %v276 = vrot.slane %v275, 1
        %v277 = vadd.f32 %v275, %v276
        %v278 = vlog2.pop %v270
        %v279 = vmul.f32 %v278, 0.6931472
        %v280 = vlog2.pop %v277
        %v281 = vmul.f32 %v280, 0.6931472
        %v284 = vcombine.low %v279, %v281
        %v286 = vsub.f32 %v258, %v284
        %v289 = vcombine.low %v270, %v277
        %v291 = vrcp.pop %v289
        %v292 = vmul.f32 %v260, %v291
        %v293 = vld [vmem:[#allocation2] sm:$0x3]
        %v295 = vcombine.high %v286, %v286
        %v297 = vmul.f32 %v221, %v286
        %v298 = vmul.f32 %v222, %v295
        %v299 = vsel %vm239, %v297, 0.0
        %v300 = vrot.slane %v299, 4
        %v301 = vadd.f32 %v299, %v300
        %v302 = vrot.slane %v301, 2
        %v303 = vadd.f32 %v301, %v302
        %v304 = vrot.slane %v303, 1
        %v305 = vadd.f32 %v303, %v304
        %v306 = vsel %vm239, %v298, 0.0
        %v307 = vrot.slane %v306, 4
        %v308 = vadd.f32 %v306, %v307
        %v309 = vrot.slane %v308, 2
        %v310 = vadd.f32 %v308, %v309
        %v311 = vrot.slane %v310, 1
        %v312 = vadd.f32 %v310, %v311
        %v313 = vsub.f32 0.0, %v305
        %v314 = vsub.f32 0.0, %v312
        %v317 = vcombine.low %v313, %v314
        %v319 = vunpack.c.l.s4 1966171168
        %v320 = vunpack.c.0.s8 %v319
        %v321 = vlaneseq
        %v322 = vshrl.u32 %v321, 7
        %v323 = vsub.s32 %v320, %v322
        %v324 = vrot.slane %v317, %v323
        %v326 = vunpack.c.l.s4 1966171168
        %v327 = vunpack.c.0.s8 %v326
        %v328 = vlaneseq
        %v329 = vshrl.u32 %v328, 7
        %v330 = vsub.s32 %v327, %v329
        %v331 = vrot.slane %v324, %v330
        %v333 = vadd.f32 %v293, %v331
        %v334 = vlaneseq
        %vm335 = vcmp.ge.s32.totalorder %v334, 0
        %vm336 = vcmp.lt.s32.totalorder %v334, 256
        %vm337 = vmand %vm335, %vm336
        %338 = vst.msk [vmem:[#allocation2] sm:$0x3] %vm337, %v333
        %v339 = vld [vmem:[#allocation3] sm:$0xff]
        %v342 = vcombine.low %v221, %v222
        %v344 = vmul.f32 %v292, %v342
        %v345 = vadd.f32 %v339, %v344
        %346 = vst [vmem:[#allocation3] sm:$0xff] %v345
        %v347 = vld [vmem:[#allocation4] sm:$0xff]
        %v350 = vcombine.low %v234, %v235
        %v352 = vmul.f32 %v292, %v350
        %v353 = vadd.f32 %v347, %v352
        %354 = vst [vmem:[#allocation4] sm:$0xff] %v353
        %v355 = vld [vmem:[#allocation5] sm:$0xff]
        %v356 = vadd.f32 %v355, %v342
        %357 = vst [vmem:[#allocation5] sm:$0xff] %v356
        %p358 = scmp.eq.s32.totalorder %s18, 1
        %p359 = pnand %p358, %p192
        %p360 = pneg %p359
        // Predicated region
        $region33: #{cross_entropy_dice_loss.1} parent=27 // pred_check
          _
        $region34: #{cross_entropy_dice_loss.1} parent=27 // pred_check_branch
          %362 = sbr.rel (%p359) target = $region36
        $region35: #{cross_entropy_dice_loss.1} parent=27 // pred_region
          %v363 = vld [vmem:[#allocation2] sm:$0x3]
          %v365 = vlaneseq
          %v366 = vshrl.u32 %v365, 7
          %v367 = vsub.s32 0, %v366
          %v368 = vrot.slane %v363, %v367
          %v369 = vlaneseq
          %v370 = vshrl.u32 %v369, 7
          %v371 = vsub.s32 1, %v370
          %v372 = vrot.slane %v363, %v371
          %vm375 = vcmask 1040384
          %v376 = vsel %vm375, %v368, 0.0
          %v377 = vsel %vm375, %v372, 0.0
          %v378 = vadd.f32 %v376, %v377
          %379 = vadd.xlane.f32.xlu0 %v378
          %v380 = vpop.xlane.xlu0 %379
          %v381 = vrot.slane %v380, 4
          %v382 = vadd.f32 %v380, %v381
          %v383 = vrot.slane %v382, 2
          %v384 = vadd.f32 %v382, %v383
          %v385 = vrot.slane %v384, 1
          %v386 = vadd.f32 %v384, %v385
          %s387 = vtos %v386
          %v388 = vstv %s387
          %v389 = vrcp.pop 512.0
          %v390 = vmul.f32 %v388, %v389
          %v391 = vld [vmem:[#allocation3] sm:$0xff]
          %v393 = vcombine.high %v391, %v391
          %v395 = vsel %vm239, %v391, 0.0
          %v396 = vsel %vm239, %v393, 0.0
          %v397 = vadd.f32 %v395, %v396
          %398 = vadd.xlane.f32.xlu0 %v397
          %v399 = vpop.xlane.xlu0 %398
          %v400 = vld [vmem:[#allocation4] sm:$0xff]
          %v402 = vcombine.high %v400, %v400
          %v404 = vsel %vm239, %v400, 0.0
          %v405 = vsel %vm239, %v402, 0.0
          %v406 = vadd.f32 %v404, %v405
          %407 = vadd.xlane.f32.xlu0 %v406
          %v408 = vpop.xlane.xlu0 %407
          %v409 = vld [vmem:[#allocation5] sm:$0xff]
          %v411 = vcombine.high %v409, %v409
          %v413 = vsel %vm239, %v409, 0.0
          %v414 = vsel %vm239, %v411, 0.0
          %v415 = vadd.f32 %v413, %v414
          %416 = vadd.xlane.f32.xlu0 %v415
          %v417 = vpop.xlane.xlu0 %416
          %v418 = vadd.f32 %v408, %v417
          %v419 = vmul.f32 %v399, 2.0
          %v420 = vadd.f32 %v419, 1.0
          %v421 = vadd.f32 %v418, 1.0
          %v422 = vrcp.pop %v421
          %v423 = vmul.f32 %v420, %v422
          %v424 = vsub.f32 1.0, %v423
          %vm425 = vcmask 3072
          %v426 = vsel %vm425, %v424, 0.0
          %427 = vadd.xlane.f32.xlu0 %v426
          %v428 = vpop.xlane.xlu0 %427
          %v429 = vrot.slane %v428, 4
          %v430 = vadd.f32 %v428, %v429
          %v431 = vrot.slane %v430, 2
          %v432 = vadd.f32 %v430, %v431
          %v433 = vrot.slane %v432, 1
          %v434 = vadd.f32 %v432, %v433
          %s435 = vtos %v434
          %v436 = vstv %s435
          %v437 = vrcp.pop 4.0
          %v438 = vmul.f32 %v436, %v437
          %v439 = vadd.f32 %v390, %v438
          %vm440 = vcmask 0
          %441 = vst.msk [vmem:[#allocation6] sm:$0x1] %vm440, %v439
        $region36: #{cross_entropy_dice_loss.1} parent=27 // pred_fallthru
          _
        // Predicated region
        $region37: #{cross_entropy_dice_loss.1} parent=27 // pred_check
          %p442 = pneg %p95
        $region38: #{cross_entropy_dice_loss.1} parent=27 // pred_check_branch
          %444 = sbr.rel (%p442) target = $region40
        $region39: #{cross_entropy_dice_loss.1} parent=27 // pred_region
          %s446 = ssub.s32 16, 16
          %447 = vsyncadd [#allocation7], %s446
          %s449 = sshll.u32 [#allocation6], 4
          %s450 = int_to_ptr.vmem [resolvable:$true] %s449
          %452 = dma.vmem_to_hbm [thread:$0]  %s450, 16, %s2, [#allocation7]
        $region40: #{cross_entropy_dice_loss.1} parent=27 // pred_fallthru
          _
        // Predicated region
        $region41: #{cross_entropy_dice_loss.1} parent=27 // pred_check
          %p453 = pneg %p95
        $region42: #{cross_entropy_dice_loss.1} parent=27 // pred_check_branch
          %455 = sbr.rel (%p453) target = $region44
        $region43: #{cross_entropy_dice_loss.1} parent=27 // pred_region
          %456 = dma.done [#allocation7], 16
        $region44: #{cross_entropy_dice_loss.1} parent=27 // pred_fallthru
          _
      $region28: #{cross_entropy_dice_loss.1} parent=5 // pred_fallthru
        _
      %p457 = scmp.le.s32.totalorder 2, %s9
      // Predicated region
      $region45: #{cross_entropy_dice_loss.1} parent=5 // pred_check
        %p458 = pneg %p457
      $region46: #{cross_entropy_dice_loss.1} parent=5 // pred_check_branch
        %460 = sbr.rel (%p458) target = $region48
      $region47: #{cross_entropy_dice_loss.1} parent=5 // pred_region
        %s461 = ssub.s32 %s9, 2
      $region48: #{cross_entropy_dice_loss.1} parent=5 // pred_fallthru
        _
    $region6: #{cross_entropy_dice_loss.1} parent=1 // loop_footer
      %s13 = sadd.s32 1, %s9
    $region7: #{cross_entropy_dice_loss.1} parent=1 // loop_footer_branch
      %8 = sbr.rel target = $region3
    $region8: #{cross_entropy_dice_loss.1} parent=1 // loop_exit
      _
    %462 = vsyncpa [#allocation7], 1
    %s463 = scalar_lea.sflag [#allocation7], 1
    %464 = vsyncpa %s463, 1

</llo_original>
